<compile_context>
chip_gen: v7x
topology: tpu7x:2x2x1
jax: 0.10.0
libtpu: 0.0.40
codegen_flags: <defaults>
</compile_context>

<pallas_src>
import jax
import jax.numpy as jnp
from jax.experimental import pallas as pl
from jax.experimental.pallas import tpu as pltpu

INPUT_DIM = 1
OUTPUT_DIM = 1

_LANES = 128              # vreg lane width (last dim)
_SUBLANES = 8             # f32 sublane count (second-to-last dim)
_MAX_BLOCK_ROWS = 8192    # 8192 x 128 f32 = 4 MiB per block
_MIN_KERNEL_ELEMS = 256 * 1024   # < ~1 MiB of f32: plain XLA fallback wins


def _linear_kernel(w_ref, b_ref, x_ref, o_ref):
    # w_ref, b_ref: (1,) f32 scalars in SMEM.
    # x_ref, o_ref: (block_rows, 128) lane-dense f32 tiles in VMEM.
    # nn.Linear(1, 1) == elementwise FMA on the VPU.
    o_ref[...] = (x_ref[...] * w_ref[0] + b_ref[0]).astype(o_ref.dtype)


def _choose_block_rows(rows):
    """Pick a (multiple-of-8) block row count, aiming for >= 2 grid steps."""
    if rows <= _SUBLANES:
        # Single tiny block; block dim equals the full array dim, so the
        # (8,128) divisibility rule is satisfied by equality.
        return rows
    half = pl.cdiv(rows, 2)                      # >= 2 steps -> both v7x TCs work
    half = _SUBLANES * pl.cdiv(half, _SUBLANES)  # sublane-aligned
    return min(half, _MAX_BLOCK_ROWS)


def linear_forward(x, weight, bias, *, force_kernel=False):
    """x: (B, 1), weight: (1, 1) [PyTorch (out, in) layout], bias: (1,).

    Returns (B, 1), matching nn.Linear(1, 1).forward(x)."""
    B, in_dim = x.shape
    out_dim = weight.shape[0]
    assert in_dim == INPUT_DIM and out_dim == OUTPUT_DIM

    # ---- small-batch fallback: XLA fuses this for free -------------------
    if not force_kernel and B < _MIN_KERNEL_ELEMS:
        return (x @ weight.T + bias).astype(x.dtype)

    # Scalars stay f32 on the SMEM/scalar path (SMEM holds 32-bit scalars).
    w_s = weight.reshape(1).astype(jnp.float32)
    b_s = bias.reshape(1).astype(jnp.float32)

    # ---- layout plumbing: lane-dense (rows, 128) view of the batch -------
    flat = x.reshape(-1)                    # contiguous: free
    rows = pl.cdiv(B, _LANES)
    padded = rows * _LANES
    if padded != B:                         # only pad when misaligned
        flat = jnp.pad(flat, (0, padded - B))
    x2d = flat.reshape(rows, _LANES)        # free bitcast when B % 128 == 0

    block_rows = _choose_block_rows(rows)
    grid = (pl.cdiv(rows, block_rows),)     # partial last block is clamped

    # Triple-buffer the streaming input only when the grid is long enough
    # for the extra buffer to matter.
    if grid[0] > 2:
        x_spec = pl.BlockSpec((block_rows, _LANES), lambda i: (i, 0),
                              pipeline_mode=pl.Buffered(3))
    else:
        x_spec = pl.BlockSpec((block_rows, _LANES), lambda i: (i, 0))

    out2d = pl.pallas_call(
        _linear_kernel,
        out_shape=jax.ShapeDtypeStruct((rows, _LANES), x.dtype),
        grid=grid,
        in_specs=[
            pl.BlockSpec(memory_space=pltpu.MemorySpace.SMEM),   # weight
            pl.BlockSpec(memory_space=pltpu.MemorySpace.SMEM),   # bias
            x_spec,
        ],
        out_specs=pl.BlockSpec((block_rows, _LANES), lambda i: (i, 0)),
        compiler_params=pltpu.CompilerParams(
            dimension_semantics=("parallel",),
            vmem_limit_bytes=32 * 1024 * 1024),
    )(w_s, b_s, x2d)

    # Restore the (B, 1) output layout (free bitcast when no padding).
    if padded != B:
        return out2d.reshape(-1)[:B].reshape(B, OUTPUT_DIM)
    return out2d.reshape(B, OUTPUT_DIM)


if __name__ == "__main__":
    key = jax.random.PRNGKey(0)
    kx, kw, kb, kx2 = jax.random.split(key, 4)

    # Deterministic parameter init (mimics nn.Linear uniform(-1/sqrt(in), ...)).
    bound = 1.0 / (INPUT_DIM ** 0.5)
    weight = jax.random.uniform(kw, (OUTPUT_DIM, INPUT_DIM),
                                minval=-bound, maxval=bound, dtype=jnp.float32)
    bias = jax.random.uniform(kb, (OUTPUT_DIM,),
                              minval=-bound, maxval=bound, dtype=jnp.float32)

    # 1) Module-scale tiny batch: takes the plain-JAX small-batch fallback.
    batch = 8
    x = jax.random.normal(kx, (batch, INPUT_DIM), dtype=jnp.float32)
    ref = x @ weight.T + bias
    out = jax.block_until_ready(linear_forward(x, weight, bias))
    assert out.shape == (batch, OUTPUT_DIM)
    assert jnp.allclose(out, ref, atol=1e-5, rtol=1e-5)

    # 2) Same tiny batch with the kernel path forced (exercises the
    #    misaligned / single-block code path).
    out_k = jax.block_until_ready(linear_forward(x, weight, bias,
                                                 force_kernel=True))
    assert out_k.shape == (batch, OUTPUT_DIM)
    assert jnp.allclose(out_k, ref, atol=1e-5, rtol=1e-5)

    # 3) Lane-aligned batch with the kernel path forced: 2-step parallel grid.
    batch2 = 4096
    x2 = jax.random.normal(kx2, (batch2, INPUT_DIM), dtype=jnp.float32)
    ref2 = x2 @ weight.T + bias
    out_k2 = jax.block_until_ready(linear_forward(x2, weight, bias,
                                                  force_kernel=True))
    assert out_k2.shape == (batch2, OUTPUT_DIM)
    assert jnp.allclose(out_k2, ref2, atol=1e-5, rtol=1e-5)

    print("KERNEL_OK")
</pallas_src>

<mosaic_0001>
module attributes {stable_mosaic.version = 11 : i64} {
  func.func @_linear_kernel(%arg0: i32, %arg1: memref<1xf32, #tpu.memory_space<smem>>, %arg2: memref<1xf32, #tpu.memory_space<smem>>, %arg3: memref<1x128xf32, #tpu.memory_space<vmem>>, %arg4: memref<1x128xf32, #tpu.memory_space<vmem>>) attributes {dimension_semantics = [#tpu.dimension_semantics<parallel>], iteration_bounds = array<i64: 1>, scalar_prefetch = 0 : i64, scratch_operands = 0 : i64, tpu.core_type = #tpu.core_type<tc>, window_params = [{transform_indices = @transform_0, window_bounds = array<i64: 1>}, {transform_indices = @transform_1, window_bounds = array<i64: 1>}, {transform_indices = @transform_2, window_bounds = array<i64: 1, 128>}, {transform_indices = @transform_3, window_bounds = array<i64: 1, 128>}]} {
    %c0 = arith.constant 0 : index
    %c0_0 = arith.constant 0 : index
    %0 = vector.load %arg3[%c0, %c0_0] : memref<1x128xf32, #tpu.memory_space<vmem>>, vector<1x128xf32>
    %c0_1 = arith.constant 0 : index
    %1 = memref.load %arg1[%c0_1] : memref<1xf32, #tpu.memory_space<smem>>
    %2 = vector.broadcast %1 : f32 to vector<1x128xf32>
    %3 = arith.mulf %0, %2 : vector<1x128xf32>
    %c0_2 = arith.constant 0 : index
    %4 = memref.load %arg2[%c0_2] : memref<1xf32, #tpu.memory_space<smem>>
    %5 = vector.broadcast %4 : f32 to vector<1x128xf32>
    %6 = arith.addf %3, %5 : vector<1x128xf32>
    %c0_3 = arith.constant 0 : index
    %c0_4 = arith.constant 0 : index
    %7 = vector.load %arg4[%c0_3, %c0_4] : memref<1x128xf32, #tpu.memory_space<vmem>>, vector<1x128xf32>
    tpu.vector_store %arg4[%c0_3, %c0_4], %6 {strides = array<i32>} : memref<1x128xf32, #tpu.memory_space<vmem>>, vector<1x128xf32>,
    return
  }
  func.func @transform_0(%arg0: i32) -> i32 {
    %c0_i32 = arith.constant 0 : i32
    %c0_i32_0 = arith.constant 0 : i32
    return %c0_i32 : i32
  }
  func.func @transform_1(%arg0: i32) -> i32 {
    %c0_i32 = arith.constant 0 : i32
    %c0_i32_0 = arith.constant 0 : i32
    return %c0_i32 : i32
  }
  func.func @transform_2(%arg0: i32) -> (i32, i32) {
    %c0_i32 = arith.constant 0 : i32
    %c0_i32_0 = arith.constant 0 : i32
    return %arg0, %c0_i32 : i32, i32
  }
  func.func @transform_3(%arg0: i32) -> (i32, i32) {
    %c0_i32 = arith.constant 0 : i32
    %c0_i32_0 = arith.constant 0 : i32
    return %arg0, %c0_i32 : i32, i32
  }
}

</mosaic_0001>

<llo_original>
// kernel: tpu_custom_call.1
$region0: #{tpu_custom_call.1}
  #allocation0 [shape = 'u32[]', space=smem, size = 0x4, offset = 0x4, fixed_abs, tag = 'smem constant byte address 0x4 - core index']
  #allocation1 [shape = 'u32[144,128]{1,0:T(1,128)}', space=vmem, size = 0x12000, scoped, tag = 'internal scratch']
  #allocation2 [shape = 'f32[1]{0:T(128)S(6)}', space=smem, size = 0x200, scoped, tag = 'scoped memory for tpu_custom_call.1']
  #allocation3 [shape = 'f32[1]{0:T(128)S(6)}', space=smem, size = 0x200, scoped, tag = 'scoped memory for tpu_custom_call.1']
  %s0 = inlined_call_operand.<no memory space> [shape: f32[1], index: 0, kind: input, shape index: {}]
  %s1 = inlined_call_operand.<no memory space> [shape: f32[1], index: 1, kind: input, shape index: {}]
  %s2 = inlined_call_operand.vmem [shape: f32[1,128], index: 2, kind: input, shape index: {}]
  %s3 = inlined_call_operand.hbm [shape: f32[1,128], index: 3, kind: output, shape index: {}]
  %s4 = sld [smem:[#allocation0]]
  $region22: #{tpu_custom_call.1} parent=0
    _
  %s6 = ssub.s32 1, %s4
  %s7 = scalar_select 0, %s6, %s4
  %8 = sst [smem:[#allocation2]] %s0
  %9 = sst [smem:[#allocation3]] %s1
  $region1: #{tpu_custom_call.1} parent=0
    #allocation4 [shape = 'u8[512]{0}', space=vmem, size = 0x400, scoped, tag = 'output window, operand 0, single buffered']
    #allocation5 [shape = 's32[1]{0}', space=sflag, size = 0x4, scoped, tag = 'scoped memory for tpu_custom_call.1']
    %10 = vsyncpa [#allocation5], 0
    // Predicated region
    $region2: #{tpu_custom_call.1} parent=1 // pred_check
      _
    $region3: #{tpu_custom_call.1} parent=1 // pred_check_branch
      %12 = sbr.rel (0) target = $region5
    $region4: #{tpu_custom_call.1} parent=1 // pred_region
      _
    $region5: #{tpu_custom_call.1} parent=1 // pred_fallthru
      _
    // Predicated region
    $region6: #{tpu_custom_call.1} parent=1 // pred_check
      _
    $region7: #{tpu_custom_call.1} parent=1 // pred_check_branch
      %14 = sbr.rel (0) target = $region9
    $region8: #{tpu_custom_call.1} parent=1 // pred_region
      _
    $region9: #{tpu_custom_call.1} parent=1 // pred_fallthru
      _
    // Predicated region
    $region10: #{tpu_custom_call.1} parent=1 // pred_check
      _
    $region11: #{tpu_custom_call.1} parent=1 // pred_check_branch
      %16 = sbr.rel (0) target = $region13
    $region12: #{tpu_custom_call.1} parent=1 // pred_region
      _
    $region13: #{tpu_custom_call.1} parent=1 // pred_fallthru
      _
    %v17 = vld [vmem:[%s2] sm:$0x1]
    %s18 = sld [smem:[#allocation2]]
    %v19 = vstv %s18
    %v20 = vmul.f32 %v17, %v19
    %s21 = sld [smem:[#allocation3]]
    %v22 = vstv %s21
    %v23 = vadd.f32 %v20, %v22
    %24 = vst [vmem:[#allocation4] sm:$0x1] %v23
    // Predicated region
    $region14: #{tpu_custom_call.1} parent=1 // pred_check
      _
    $region15: #{tpu_custom_call.1} parent=1 // pred_check_branch
      %26 = sbr.rel (0) target = $region17
    $region16: #{tpu_custom_call.1} parent=1 // pred_region
      %s28 = ssub.s32 16, 16
      %29 = vsyncadd [#allocation5], %s28
      %s31 = sshll.u32 [#allocation4], 4
      %s32 = int_to_ptr.vmem [resolvable:$true] %s31
      %34 = dma.vmem_to_hbm [thread:$0]  %s32, 16, %s3, [#allocation5]
    $region17: #{tpu_custom_call.1} parent=1 // pred_fallthru
      _
    // Predicated region
    $region18: #{tpu_custom_call.1} parent=1 // pred_check
      _
    $region19: #{tpu_custom_call.1} parent=1 // pred_check_branch
      %36 = sbr.rel (0) target = $region21
    $region20: #{tpu_custom_call.1} parent=1 // pred_region
      %37 = dma.done [#allocation5], 16
    $region21: #{tpu_custom_call.1} parent=1 // pred_fallthru
      _
    %38 = vsyncpa [#allocation5], 1

</llo_original>
